<compile_context>
chip_gen: v6e
topology: v6e:2x2x1
jax: 0.10.0
libtpu: 0.0.40
codegen_flags: <defaults>
</compile_context>

<pallas_src>
import functools

import jax
import jax.numpy as jnp
from jax.experimental import pallas as pl
from jax.experimental.pallas import tpu as pltpu


# ---------------------------------------------------------------------------
# helpers
# ---------------------------------------------------------------------------
def _round_up(x, m):
    return ((x + m - 1) // m) * m


def _pad2(x, rows, cols):
    return jnp.pad(x, ((0, rows - x.shape[0]), (0, cols - x.shape[1])))


# ---------------------------------------------------------------------------
# Pallas kernel: one fused (layer, dst-ntype) computation
# ---------------------------------------------------------------------------
def _fused_layer_dst_kernel(x_ref, w_ref, b_ref, a_ref, rs_ref, o_ref, *, apply_act):
    """One (dst-tile, etype) grid step:
         o_tile += A_e_tile @ (X_e @ W_e) + rowsum(A_e_tile) * b_e
       Output block is resident across the etype axis: zero-init at e==0, accumulate each step,
       optional fused leaky_relu(0.01) epilogue at the last etype step (layer 1)."""
    e = pl.program_id(1)

    @pl.when(e == 0)
    def _init():
        o_ref[...] = jnp.zeros_like(o_ref)

    # Wh = X @ W   (bf16 x bf16 -> f32 accumulation on the MXU)
    wh = jnp.dot(x_ref[0], w_ref[0], preferred_element_type=jnp.float32)
    # mean aggregation (A already row-normalised); cast Wh back to the matmul dtype for the MXU.
    msg = jnp.dot(a_ref[0], wh.astype(a_ref.dtype), preferred_element_type=jnp.float32)
    # folded bias: rowsum(A) (TM,1) * b (1,F)  ==  A @ (Wh + b) with zero-in-degree rows kept 0.
    o_ref[...] += msg + rs_ref[0] * b_ref[0]

    if apply_act:
        @pl.when(e == pl.num_programs(1) - 1)
        def _epilogue():
            v = o_ref[...]
            o_ref[...] = jnp.where(v >= 0, v, jnp.float32(0.01) * v)


def _fused_layer_dst(items, feat_dict, layer_params, *, apply_act, mm_dtype):
    """items: list of (src_ntype, etype, A_norm (N_dst, N_src)) sharing the same dst ntype.
    Returns (N_dst, F_out) f32 = sum_e A_e @ (X_src_e @ W_e + b_e), optionally leaky_relu'd."""
    n_e = len(items)
    n_dst = items[0][2].shape[0]
    f_out = layer_params[items[0][1]][0].shape[1]

    # Padded, lane-dense dims (features -> multiples of 128; nodes -> sublane multiples).
    f_out_pad = _round_up(f_out, 128)
    f_in_pad = _round_up(max(feat_dict[src].shape[1] for src, _, _ in items), 128)
    n_src_pad = _round_up(max(feat_dict[src].shape[0] for src, _, _ in items), 128)
    tile_m = 128 if n_dst > 128 else _round_up(n_dst, 16)
    n_dst_pad = _round_up(n_dst, tile_m)
    n_dst_tiles = n_dst_pad // tile_m

    xs, ws, bs, a_s, rss = [], [], [], [], []
    for src, etype, a in items:
        x = feat_dict[src].astype(jnp.float32)
        w, b = layer_params[etype]
        w = w.astype(jnp.float32)
        b = b.astype(jnp.float32)
        a = a.astype(jnp.float32)
        rs = jnp.sum(a, axis=1, keepdims=True)        # true row sum in f32 (0 for isolated dst)
        xs.append(_pad2(x, n_src_pad, f_in_pad).astype(mm_dtype))
        ws.append(_pad2(w, f_in_pad, f_out_pad).astype(mm_dtype))
        bs.append(jnp.pad(b, (0, f_out_pad - f_out)).reshape(1, f_out_pad))
        a_s.append(_pad2(a, n_dst_pad, n_src_pad).astype(mm_dtype))
        rss.append(_pad2(rs, n_dst_pad, 1))

    x_stack = jnp.stack(xs)      # (n_e, n_src_pad, f_in_pad)   mm_dtype
    w_stack = jnp.stack(ws)      # (n_e, f_in_pad, f_out_pad)   mm_dtype
    b_stack = jnp.stack(bs)      # (n_e, 1, f_out_pad)          f32
    a_stack = jnp.stack(a_s)     # (n_e, n_dst_pad, n_src_pad)  mm_dtype
    rs_stack = jnp.stack(rss)    # (n_e, n_dst_pad, 1)          f32

    flops = 2 * n_e * (n_dst_tiles * n_src_pad * f_in_pad * f_out_pad
                       + n_dst_pad * n_src_pad * f_out_pad)
    bytes_accessed = sum(int(t.size) * t.dtype.itemsize
                         for t in (x_stack, w_stack, b_stack, a_stack, rs_stack))
    bytes_accessed += int(n_dst_pad * f_out_pad * 4)

    out = pl.pallas_call(
        functools.partial(_fused_layer_dst_kernel, apply_act=apply_act),
        out_shape=jax.ShapeDtypeStruct((n_dst_pad, f_out_pad), jnp.float32),
        grid=(n_dst_tiles, n_e),
        in_specs=[
            pl.BlockSpec((1, n_src_pad, f_in_pad), lambda d, e: (e, 0, 0)),   # X_e
            pl.BlockSpec((1, f_in_pad, f_out_pad), lambda d, e: (e, 0, 0)),   # W_e
            pl.BlockSpec((1, 1, f_out_pad), lambda d, e: (e, 0, 0)),          # b_e
            pl.BlockSpec((1, tile_m, n_src_pad), lambda d, e: (e, d, 0)),     # A_e dst tile
            pl.BlockSpec((1, tile_m, 1), lambda d, e: (e, d, 0)),             # rowsum(A_e) tile
        ],
        out_specs=pl.BlockSpec((tile_m, f_out_pad), lambda d, e: (d, 0)),     # resident over e
        compiler_params=pltpu.CompilerParams(
            dimension_semantics=("parallel", "arbitrary"),
            vmem_limit_bytes=32 * 1024 * 1024),
        cost_estimate=pl.CostEstimate(flops=flops, transcendentals=0,
                                      bytes_accessed=bytes_accessed),
    )(x_stack, w_stack, b_stack, a_stack, rs_stack)
    return out[:n_dst, :f_out]


# ---------------------------------------------------------------------------
# HeteroRGCNLayer / HRGCN wrappers
# ---------------------------------------------------------------------------
def hetero_rgcn_layer(graph_adj, feat_dict, layer_params, *, apply_leaky_relu=False,
                      mm_dtype=jnp.bfloat16):
    """graph_adj: {(src, etype, dst): A_norm (N_dst, N_src)}  (only etypes with >0 edges).
    layer_params: {etype: (W (F_in, F_out), b (F_out,))}.
    One fused Pallas kernel per dst ntype: per-etype Linear + mean aggregation, cross-etype 'sum'
    and (for layer 1) leaky_relu are all fused inside the kernel."""
    by_dst = {}
    for (src, etype, dst), a in graph_adj.items():
        by_dst.setdefault(dst, []).append((src, etype, a))
    return {dst: _fused_layer_dst(items, feat_dict, layer_params,
                                  apply_act=apply_leaky_relu, mm_dtype=mm_dtype)
            for dst, items in by_dst.items()}


def hrgcn_forward(blocks, input_dict, params1, params2, lp=True, mm_dtype=jnp.bfloat16):
    # TODO(synk): dgicorrupt (host-side random permutation of input features) and the
    # graphmask_forward / gm_online gating path are training-only and not implemented.
    h = hetero_rgcn_layer(blocks[0], input_dict, params1,
                          apply_leaky_relu=True, mm_dtype=mm_dtype)   # layer1 + leaky_relu fused
    h = hetero_rgcn_layer(blocks[1], h, params2,
                          apply_leaky_relu=False, mm_dtype=mm_dtype)  # layer2
    if lp:
        return h
    return {k: v[None, ...] for k, v in h.items()}


# ---------------------------------------------------------------------------
# Pure-JAX references (for correctness check)
# ---------------------------------------------------------------------------
def _layer_ref(graph_adj, feat_dict, layer_params, mm_dtype):
    # Mirrors the kernel's numerics (bf16 matmul inputs, f32 accumulation, folded bias).
    out = {}
    for (src, etype, dst), a in graph_adj.items():
        w, b = layer_params[etype]
        x = feat_dict[src].astype(jnp.float32)
        a = a.astype(jnp.float32)
        wh = jnp.dot(x.astype(mm_dtype), w.astype(mm_dtype),
                     preferred_element_type=jnp.float32)
        contrib = jnp.dot(a.astype(mm_dtype), wh.astype(mm_dtype),
                          preferred_element_type=jnp.float32)
        contrib = contrib + jnp.sum(a, axis=1, keepdims=True) * b[None, :].astype(jnp.float32)
        out[dst] = contrib if dst not in out else out[dst] + contrib
    return out


def _forward_ref(blocks, input_dict, p1, p2, mm_dtype):
    h = _layer_ref(blocks[0], input_dict, p1, mm_dtype)
    h = {k: jnp.where(v >= 0, v, 0.01 * v) for k, v in h.items()}
    return _layer_ref(blocks[1], h, p2, mm_dtype)


def _forward_ref_f32(blocks, input_dict, p1, p2):
    # Exact module math in f32: A_norm @ (X @ W + b), cross-etype sum, leaky_relu in between.
    def layer(graph_adj, feat, params):
        out = {}
        for (src, etype, dst), a in graph_adj.items():
            w, b = params[etype]
            contrib = a @ (feat[src] @ w + b)
            out[dst] = contrib if dst not in out else out[dst] + contrib
        return out
    h = layer(blocks[0], input_dict, p1)
    h = {k: jnp.where(v >= 0, v, 0.01 * v) for k, v in h.items()}
    return layer(blocks[1], h, p2)


# ---------------------------------------------------------------------------
# Deterministic setup
# ---------------------------------------------------------------------------
def _linear_init(key, fan_in, fan_out):
    # mimic torch nn.Linear default: U(-1/sqrt(fan_in), 1/sqrt(fan_in))
    kw, kb = jax.random.split(key)
    bound = 1.0 / (fan_in ** 0.5)
    w = jax.random.uniform(kw, (fan_in, fan_out), jnp.float32, -bound, bound)
    b = jax.random.uniform(kb, (fan_out,), jnp.float32, -bound, bound)
    return w, b


def _mean_norm_adj(key, n_dst, n_src, p=0.35):
    adj = jax.random.bernoulli(key, p, (n_dst, n_src)).astype(jnp.float32)
    deg = jnp.sum(adj, axis=1, keepdims=True)
    return adj / jnp.maximum(deg, 1.0)  # zero-in-degree rows stay all-zero (DGL mean -> 0)


if __name__ == "__main__":
    key = jax.random.PRNGKey(0)

    # Small synthetic heterogeneous graph
    in_size, hidden_size, out_size = 32, 32, 16
    n_nodes = {"drug": 16, "protein": 16}
    canonical_etypes = [
        ("drug", "dd", "drug"),
        ("drug", "dp", "protein"),
        ("protein", "rev_dp", "drug"),
    ]
    etypes = [e for _, e, _ in canonical_etypes]

    keys = jax.random.split(key, 16)

    # node input features
    input_dict = {
        "drug": jax.random.normal(keys[0], (n_nodes["drug"], in_size), jnp.float32),
        "protein": jax.random.normal(keys[1], (n_nodes["protein"], in_size), jnp.float32),
    }

    # row-normalised adjacency per etype; same graph reused for both blocks
    graph_adj = {}
    for i, (src, e, dst) in enumerate(canonical_etypes):
        graph_adj[(src, e, dst)] = _mean_norm_adj(keys[2 + i], n_nodes[dst], n_nodes[src])
    blocks = [graph_adj, graph_adj]

    # HRGCN parameters: one Linear per etype per layer
    params1 = {e: _linear_init(keys[6 + i], in_size, hidden_size) for i, e in enumerate(etypes)}
    params2 = {e: _linear_init(keys[10 + i], hidden_size, out_size) for i, e in enumerate(etypes)}

    # run the fused Pallas implementation (bf16 matmul operands, f32 accumulation)
    h = hrgcn_forward(blocks, input_dict, params1, params2, lp=True)
    h = {k: jax.block_until_ready(v) for k, v in h.items()}

    # verify: tight vs a reference with the same bf16 matmul numerics,
    #         loose vs the exact f32 module semantics.
    h_ref = _forward_ref(blocks, input_dict, params1, params2, jnp.bfloat16)
    h_ref32 = _forward_ref_f32(blocks, input_dict, params1, params2)
    for ntype in h_ref:
        assert h[ntype].shape == (n_nodes[ntype], out_size), ntype
        assert jnp.allclose(h[ntype], h_ref[ntype], atol=2e-3, rtol=2e-3), ntype
        assert jnp.allclose(h[ntype], h_ref32[ntype], atol=5e-2, rtol=5e-2), ntype

    print("KERNEL_OK")
</pallas_src>

<mosaic_0001>
module attributes {stable_mosaic.version = 11 : i64} {
  func.func @_fused_layer_dst_kernel(%arg0: i32, %arg1: i32, %arg2: memref<1x128x128xbf16, #tpu.memory_space<vmem>>, %arg3: memref<1x128x128xbf16, #tpu.memory_space<vmem>>, %arg4: memref<1x1x128xf32, #tpu.memory_space<vmem>>, %arg5: memref<1x16x128xbf16, #tpu.memory_space<vmem>>, %arg6: memref<1x16x1xf32, #tpu.memory_space<vmem>>, %arg7: memref<16x128xf32, #tpu.memory_space<vmem>>) attributes {dimension_semantics = [#tpu.dimension_semantics<parallel>, #tpu.dimension_semantics<arbitrary>], iteration_bounds = array<i64: 1, 2>, scalar_prefetch = 0 : i64, scratch_operands = 0 : i64, tpu.core_type = #tpu.core_type<tc>, window_params = [{transform_indices = @transform_0, window_bounds = array<i64: 1, 128, 128>}, {transform_indices = @transform_1, window_bounds = array<i64: 1, 128, 128>}, {transform_indices = @transform_2, window_bounds = array<i64: 1, 1, 128>}, {transform_indices = @transform_3, window_bounds = array<i64: 1, 16, 128>}, {transform_indices = @transform_4, window_bounds = array<i64: 1, 16, 1>}, {transform_indices = @transform_5, window_bounds = array<i64: 16, 128>}]} {
    %c0_i32 = arith.constant 0 : i32
    %0 = arith.cmpi eq, %arg1, %c0_i32 : i32
    %1 = arith.extui %0 : i1 to i32
    %c0_i32_0 = arith.constant 0 : i32
    %2 = arith.cmpi ne, %1, %c0_i32_0 : i32
    scf.if %2 {
      %cst_21 = arith.constant 0.000000e+00 : f32
      %26 = vector.broadcast %cst_21 : f32 to vector<16x128xf32>
      %c0_22 = arith.constant 0 : index
      %c0_23 = arith.constant 0 : index
      %27 = vector.load %arg7[%c0_22, %c0_23] : memref<16x128xf32, #tpu.memory_space<vmem>>, vector<16x128xf32>
      tpu.vector_store %arg7[%c0_22, %c0_23], %26 {strides = array<i32>} : memref<16x128xf32, #tpu.memory_space<vmem>>, vector<16x128xf32>,
    } else {
    }
    %c0 = arith.constant 0 : index
    %c0_1 = arith.constant 0 : index
    %c0_2 = arith.constant 0 : index
    %3 = vector.load %arg2[%c0, %c0_1, %c0_2] : memref<1x128x128xbf16, #tpu.memory_space<vmem>>, vector<1x128x128xbf16>
    %4 = vector.shape_cast %3 : vector<1x128x128xbf16> to vector<128x128xbf16>
    %c0_3 = arith.constant 0 : index
    %c0_4 = arith.constant 0 : index
    %c0_5 = arith.constant 0 : index
    %5 = vector.load %arg3[%c0_3, %c0_4, %c0_5] : memref<1x128x128xbf16, #tpu.memory_space<vmem>>, vector<1x128x128xbf16>
    %6 = vector.shape_cast %5 : vector<1x128x128xbf16> to vector<128x128xbf16>
    %cst = arith.constant dense<0.000000e+00> : vector<128x128xf32>
    %7 = tpu.matmul %4, %6, %cst {dimension_numbers = #tpu.dot_dimension_numbers<[1], [0], [0], [1], [0, 0, 1, 1], [], []>} : vector<128x128xbf16>, vector<128x128xbf16>, vector<128x128xf32> -> vector<128x128xf32>
    %c0_6 = arith.constant 0 : index
    %c0_7 = arith.constant 0 : index
    %c0_8 = arith.constant 0 : index
    %8 = vector.load %arg5[%c0_6, %c0_7, %c0_8] : memref<1x16x128xbf16, #tpu.memory_space<vmem>>, vector<1x16x128xbf16>
    %9 = vector.shape_cast %8 : vector<1x16x128xbf16> to vector<16x128xbf16>
    %10 = arith.truncf %7 : vector<128x128xf32> to vector<128x128xbf16>
    %cst_9 = arith.constant dense<0.000000e+00> : vector<16x128xf32>
    %11 = tpu.matmul %9, %10, %cst_9 {dimension_numbers = #tpu.dot_dimension_numbers<[1], [0], [0], [1], [0, 0, 1, 1], [], []>} : vector<16x128xbf16>, vector<128x128xbf16>, vector<16x128xf32> -> vector<16x128xf32>
    %c0_10 = arith.constant 0 : index
    %c0_11 = arith.constant 0 : index
    %12 = vector.load %arg7[%c0_10, %c0_11] : memref<16x128xf32, #tpu.memory_space<vmem>>, vector<16x128xf32>
    %c0_12 = arith.constant 0 : index
    %c0_13 = arith.constant 0 : index
    %c0_14 = arith.constant 0 : index
    %13 = vector.load %arg6[%c0_12, %c0_13, %c0_14] : memref<1x16x1xf32, #tpu.memory_space<vmem>>, vector<1x16x1xf32>
    %14 = vector.shape_cast %13 : vector<1x16x1xf32> to vector<16x1xf32>
    %c0_15 = arith.constant 0 : index
    %c0_16 = arith.constant 0 : index
    %c0_17 = arith.constant 0 : index
    %15 = vector.load %arg4[%c0_15, %c0_16, %c0_17] : memref<1x1x128xf32, #tpu.memory_space<vmem>>, vector<1x1x128xf32>
    %16 = vector.shape_cast %15 : vector<1x1x128xf32> to vector<1x128xf32>
    %17 = vector.broadcast %14 : vector<16x1xf32> to vector<16x128xf32>
    %18 = vector.broadcast %16 : vector<1x128xf32> to vector<16x128xf32>
    %19 = arith.mulf %17, %18 : vector<16x128xf32>
    %20 = arith.addf %11, %19 : vector<16x128xf32>
    %21 = arith.addf %12, %20 : vector<16x128xf32>
    %c0_18 = arith.constant 0 : index
    %c0_19 = arith.constant 0 : index
    %22 = vector.load %arg7[%c0_18, %c0_19] : memref<16x128xf32, #tpu.memory_space<vmem>>, vector<16x128xf32>
    tpu.vector_store %arg7[%c0_18, %c0_19], %21 {strides = array<i32>} : memref<16x128xf32, #tpu.memory_space<vmem>>, vector<16x128xf32>,
    %c1_i32 = arith.constant 1 : i32
    %23 = arith.cmpi eq, %arg1, %c1_i32 : i32
    %24 = arith.extui %23 : i1 to i32
    %c0_i32_20 = arith.constant 0 : i32
    %25 = arith.cmpi ne, %24, %c0_i32_20 : i32
    scf.if %25 {
      %c0_21 = arith.constant 0 : index
      %c0_22 = arith.constant 0 : index
      %26 = vector.load %arg7[%c0_21, %c0_22] : memref<16x128xf32, #tpu.memory_space<vmem>>, vector<16x128xf32>
      %cst_23 = arith.constant 0.000000e+00 : f32
      %27 = vector.broadcast %cst_23 : f32 to vector<16x128xf32>
      %28 = arith.cmpf oge, %26, %27 : vector<16x128xf32>
      %cst_24 = arith.constant 0.00999999977 : f32
      %29 = vector.broadcast %cst_24 : f32 to vector<16x128xf32>
      %30 = arith.mulf %29, %26 : vector<16x128xf32>
      %31 = arith.select %28, %26, %30 : vector<16x128xi1>, vector<16x128xf32>
      %c0_25 = arith.constant 0 : index
      %c0_26 = arith.constant 0 : index
      %32 = vector.load %arg7[%c0_25, %c0_26] : memref<16x128xf32, #tpu.memory_space<vmem>>, vector<16x128xf32>
      tpu.vector_store %arg7[%c0_25, %c0_26], %31 {strides = array<i32>} : memref<16x128xf32, #tpu.memory_space<vmem>>, vector<16x128xf32>,
    } else {
    }
    return
  }
  func.func @transform_0(%arg0: i32, %arg1: i32) -> (i32, i32, i32) {
    %c0_i32 = arith.constant 0 : i32
    %c0_i32_0 = arith.constant 0 : i32
    %c0_i32_1 = arith.constant 0 : i32
    return %arg1, %c0_i32, %c0_i32_0 : i32, i32, i32
  }
  func.func @transform_1(%arg0: i32, %arg1: i32) -> (i32, i32, i32) {
    %c0_i32 = arith.constant 0 : i32
    %c0_i32_0 = arith.constant 0 : i32
    %c0_i32_1 = arith.constant 0 : i32
    return %arg1, %c0_i32, %c0_i32_0 : i32, i32, i32
  }
  func.func @transform_2(%arg0: i32, %arg1: i32) -> (i32, i32, i32) {
    %c0_i32 = arith.constant 0 : i32
    %c0_i32_0 = arith.constant 0 : i32
    %c0_i32_1 = arith.constant 0 : i32
    return %arg1, %c0_i32, %c0_i32_0 : i32, i32, i32
  }
  func.func @transform_3(%arg0: i32, %arg1: i32) -> (i32, i32, i32) {
    %c0_i32 = arith.constant 0 : i32
    %c0_i32_0 = arith.constant 0 : i32
    return %arg1, %arg0, %c0_i32 : i32, i32, i32
  }
  func.func @transform_4(%arg0: i32, %arg1: i32) -> (i32, i32, i32) {
    %c0_i32 = arith.constant 0 : i32
    %c0_i32_0 = arith.constant 0 : i32
    return %arg1, %arg0, %c0_i32 : i32, i32, i32
  }
  func.func @transform_5(%arg0: i32, %arg1: i32) -> (i32, i32) {
    %c0_i32 = arith.constant 0 : i32
    %c0_i32_0 = arith.constant 0 : i32
    return %arg0, %c0_i32 : i32, i32
  }
}

</mosaic_0001>

<llo_original>
// kernel: tpu_custom_call.1
$region0: #{tpu_custom_call.1}
  #allocation0 [shape = 'u32[]', space=smem, size = 0x4, offset = 0x4, fixed_abs, tag = 'smem constant byte address 0x4 - core index']
  #allocation1 [shape = 'u32[144,128]{1,0:T(1,128)}', space=vmem, size = 0x12000, scoped, tag = 'internal scratch']
  %s0 = inlined_call_operand.hbm [shape: bf16[2,128,128], index: 0, kind: input, shape index: {}]
  %s1 = inlined_call_operand.hbm [shape: bf16[2,128,128], index: 1, kind: input, shape index: {}]
  %s2 = inlined_call_operand.vmem [shape: f32[2,1,128], index: 2, kind: input, shape index: {}]
  %s3 = inlined_call_operand.vmem [shape: bf16[2,16,128], index: 3, kind: input, shape index: {}]
  %s4 = inlined_call_operand.vmem [shape: f32[2,16,1], index: 4, kind: input, shape index: {}]
  %s5 = inlined_call_operand.hbm [shape: f32[16,128], index: 5, kind: output, shape index: {}]
  %s6 = sld [smem:[#allocation0]]
  $region69: #{tpu_custom_call.1} parent=0
    _
  %s8 = ssub.s32 1, %s6
  %s9 = scalar_select 0, %s8, %s6
  $region1: #{tpu_custom_call.1} parent=0
    #allocation2 [shape = 'u8[65536]{0}', space=vmem, size = 0x10000, scoped, tag = 'input window, operand 0']
    #allocation3 [shape = 's32[2]{0}', space=sflag, size = 0x8, scoped, tag = 'scoped memory for tpu_custom_call.1']
    #allocation4 [shape = 's32[2]{0}', space=sflag, size = 0x8, scoped, tag = 'scoped memory for tpu_custom_call.1']
    #allocation5 [shape = 'u8[65536]{0}', space=vmem, size = 0x10000, scoped, tag = 'input window, operand 1']
    #allocation6 [shape = 's32[2]{0}', space=sflag, size = 0x8, scoped, tag = 'scoped memory for tpu_custom_call.1']
    #allocation7 [shape = 'u8[8192]{0}', space=vmem, size = 0x2000, scoped, tag = 'output window, operand 0, single buffered']
    %10 = vsyncpa [#allocation3], 0
    %s11 = scalar_lea.sflag [#allocation3], 1
    %12 = vsyncpa %s11, 0
    %13 = vsyncpa [#allocation6], 0
    %s14 = scalar_lea.sflag [#allocation6], 1
    %15 = vsyncpa %s14, 0
    %16 = vsyncpa [#allocation4], 0
    loop: start=0, step=1, limit=4
    $region2: #{tpu_custom_call.1} parent=1 // loop_pre_header
      _
    $region3: #{tpu_custom_call.1} parent=1 // loop_header
      %s18 = sphi 0, %s22
      %p19 = scmp.ge.s32.totalorder %s18, 4
      %s25 = sphi 0, %s37
      %s26 = sphi 0, %s33
      %s27 = sphi 0, %s25
      %s28 = sphi 0, %s26
      %s29 = sphi 0, %s27
      %s30 = sphi 0, %s28
      %s40 = sphi 0, %s42
      %s43 = sphi 0, %s40
      %s44 = sphi 0, %s43
      %s60 = sphi 0, %s44
      %s66 = sphi 0, %s68
      %s69 = sphi 0, %s66
      %s70 = sphi 0, %s69
      %s86 = sphi 0, %s70
      %s92 = sphi 0, %s94
      %s95 = sphi 0, %s92
      %s96 = sphi 0, %s95
      %s112 = sphi 0, %s96
      %s120 = sphi 0, %s122
      %s123 = sphi 0, %s120
      %s124 = sphi 0, %s123
      %s140 = sphi 0, %s124
      %s148 = sphi 0, %s150
      %s151 = sphi 0, %s148
      %s152 = sphi 0, %s151
      %s168 = sphi 0, %s152
      %s174 = sphi 0, %s176
      %s177 = sphi 0, %s174
      %s178 = sphi 0, %s177
      %s194 = sphi 0, %s178
    $region4: #{tpu_custom_call.1} parent=1 // loop_header_branch
      %21 = sbr.rel (%p19) target = $region8
    $region5: #{tpu_custom_call.1} parent=1 // loop_body
      %s23 = ssub.s32 %s18, 1
      %s24 = ssub.s32 %s18, 2
      %s31 = sadd.s32 1, %s26
      %p32 = scmp.ge.s32.totalorder %s31, 2
      %s33 = scalar_select %p32, 0, %s31
      %s34 = sadd.s32 1, %s25
      %s35 = scalar_select %p32, %s34, %s25
      %p36 = scmp.ge.s32.totalorder %s35, 1
      %s37 = scalar_select %p36, 0, %s35
      %s38 = ssub.s32 %s26, %s33
      %p39 = scmp.eq.s32.totalorder %s38, 0
      %s41 = sadd.s32 %s40, 1
      %s42 = scalar_select %p39, %s40, %s41
      %p45 = pneg %p39
      %p46 = scmp.eq.s32.totalorder %s18, 1
      %p47 = por %p45, %p46
      %p48 = scmp.ne.s32.totalorder %s40, %s43
      %p49 = scmp.eq.s32.totalorder %s18, 0
      %p50 = por %p48, %p49
      %p51 = scmp.ne.s32.totalorder %s40, %s43
      %p52 = scmp.eq.s32.totalorder %s23, 1
      %p53 = por %p51, %p52
      %p54 = scmp.ne.s32.totalorder %s43, %s44
      %p55 = scmp.eq.s32.totalorder %s23, 0
      %p56 = por %p54, %p55
      %p57 = scmp.ne.s32.totalorder %s43, %s44
      %p58 = scmp.eq.s32.totalorder %s24, 1
      %p59 = por %p57, %p58
      %p61 = scmp.ne.s32.totalorder %s44, %s60
      %p62 = scmp.eq.s32.totalorder %s24, 0
      %p63 = por %p61, %p62
      %s64 = ssub.s32 %s26, %s33
      %p65 = scmp.eq.s32.totalorder %s64, 0
      %s67 = sadd.s32 %s66, 1
      %s68 = scalar_select %p65, %s66, %s67
      %p71 = pneg %p65
      %p72 = scmp.eq.s32.totalorder %s18, 1
      %p73 = por %p71, %p72
      %p74 = scmp.ne.s32.totalorder %s66, %s69
      %p75 = scmp.eq.s32.totalorder %s18, 0
      %p76 = por %p74, %p75
      %p77 = scmp.ne.s32.totalorder %s66, %s69
      %p78 = scmp.eq.s32.totalorder %s23, 1
      %p79 = por %p77, %p78
      %p80 = scmp.ne.s32.totalorder %s69, %s70
      %p81 = scmp.eq.s32.totalorder %s23, 0
      %p82 = por %p80, %p81
      %p83 = scmp.ne.s32.totalorder %s69, %s70
      %p84 = scmp.eq.s32.totalorder %s24, 1
      %p85 = por %p83, %p84
      %p87 = scmp.ne.s32.totalorder %s70, %s86
      %p88 = scmp.eq.s32.totalorder %s24, 0
      %p89 = por %p87, %p88
      %s90 = ssub.s32 %s26, %s33
      %p91 = scmp.eq.s32.totalorder %s90, 0
      %s93 = sadd.s32 %s92, 1
      %s94 = scalar_select %p91, %s92, %s93
      %p97 = pneg %p91
      %p98 = scmp.eq.s32.totalorder %s18, 1
      %p99 = por %p97, %p98
      %p100 = scmp.ne.s32.totalorder %s92, %s95
      %p101 = scmp.eq.s32.totalorder %s18, 0
      %p102 = por %p100, %p101
      %p103 = scmp.ne.s32.totalorder %s92, %s95
      %p104 = scmp.eq.s32.totalorder %s23, 1
      %p105 = por %p103, %p104
      %p106 = scmp.ne.s32.totalorder %s95, %s96
      %p107 = scmp.eq.s32.totalorder %s23, 0
      %p108 = por %p106, %p107
      %p109 = scmp.ne.s32.totalorder %s95, %s96
      %p110 = scmp.eq.s32.totalorder %s24, 1
      %p111 = por %p109, %p110
      %p113 = scmp.ne.s32.totalorder %s96, %s112
      %p114 = scmp.eq.s32.totalorder %s24, 0
      %p115 = por %p113, %p114
      %s116 = ssub.s32 %s26, %s33
      %s117 = ssub.s32 %s25, %s37
      %s118 = sor.u32 %s116, %s117
      %p119 = scmp.eq.s32.totalorder %s118, 0
      %s121 = sadd.s32 %s120, 1
      %s122 = scalar_select %p119, %s120, %s121
      %p125 = pneg %p119
      %p126 = scmp.eq.s32.totalorder %s18, 1
      %p127 = por %p125, %p126
      %p128 = scmp.ne.s32.totalorder %s120, %s123
      %p129 = scmp.eq.s32.totalorder %s18, 0
      %p130 = por %p128, %p129
      %p131 = scmp.ne.s32.totalorder %s120, %s123
      %p132 = scmp.eq.s32.totalorder %s23, 1
      %p133 = por %p131, %p132
      %p134 = scmp.ne.s32.totalorder %s123, %s124
      %p135 = scmp.eq.s32.totalorder %s23, 0
      %p136 = por %p134, %p135
      %p137 = scmp.ne.s32.totalorder %s123, %s124
      %p138 = scmp.eq.s32.totalorder %s24, 1
      %p139 = por %p137, %p138
      %p141 = scmp.ne.s32.totalorder %s124, %s140
      %p142 = scmp.eq.s32.totalorder %s24, 0
      %p143 = por %p141, %p142
      %s144 = ssub.s32 %s26, %s33
      %s145 = ssub.s32 %s25, %s37
      %s146 = sor.u32 %s144, %s145
      %p147 = scmp.eq.s32.totalorder %s146, 0
      %s149 = sadd.s32 %s148, 1
      %s150 = scalar_select %p147, %s148, %s149
      %p153 = pneg %p147
      %p154 = scmp.eq.s32.totalorder %s18, 1
      %p155 = por %p153, %p154
      %p156 = scmp.ne.s32.totalorder %s148, %s151
      %p157 = scmp.eq.s32.totalorder %s18, 0
      %p158 = por %p156, %p157
      %p159 = scmp.ne.s32.totalorder %s148, %s151
      %p160 = scmp.eq.s32.totalorder %s23, 1
      %p161 = por %p159, %p160
      %p162 = scmp.ne.s32.totalorder %s151, %s152
      %p163 = scmp.eq.s32.totalorder %s23, 0
      %p164 = por %p162, %p163
      %p165 = scmp.ne.s32.totalorder %s151, %s152
      %p166 = scmp.eq.s32.totalorder %s24, 1
      %p167 = por %p165, %p166
      %p169 = scmp.ne.s32.totalorder %s152, %s168
      %p170 = scmp.eq.s32.totalorder %s24, 0
      %p171 = por %p169, %p170
      %s172 = ssub.s32 %s25, %s37
      %p173 = scmp.eq.s32.totalorder %s172, 0
      %s175 = sadd.s32 %s174, 1
      %s176 = scalar_select %p173, %s174, %s175
      %p179 = pneg %p173
      %p180 = scmp.eq.s32.totalorder %s18, 1
      %p181 = por %p179, %p180
      %p182 = scmp.ne.s32.totalorder %s174, %s177
      %p183 = scmp.eq.s32.totalorder %s18, 0
      %p184 = por %p182, %p183
      %p185 = scmp.ne.s32.totalorder %s174, %s177
      %p186 = scmp.eq.s32.totalorder %s23, 1
      %p187 = por %p185, %p186
      %p188 = scmp.ne.s32.totalorder %s177, %s178
      %p189 = scmp.eq.s32.totalorder %s23, 0
      %p190 = por %p188, %p189
      %p191 = scmp.ne.s32.totalorder %s177, %s178
      %p192 = scmp.eq.s32.totalorder %s24, 1
      %p193 = por %p191, %p192
      %p195 = scmp.ne.s32.totalorder %s178, %s194
      %p196 = scmp.eq.s32.totalorder %s24, 0
      %p197 = por %p195, %p196
      %p198 = scmp.le.s32.totalorder 1, %s18
      %p199 = scmp.lt.s32.totalorder %s18, 3
      %p200 = pnand %p198, %p199
      %p201 = pneg %p200
      // Predicated region
      $region9: #{tpu_custom_call.1} parent=5 // pred_check
        _
      $region10: #{tpu_custom_call.1} parent=5 // pred_check_branch
        %203 = sbr.rel (%p200) target = $region12
      $region11: #{tpu_custom_call.1} parent=5 // pred_region
        %s204 = ssub.s32 %s18, 1
      $region12: #{tpu_custom_call.1} parent=5 // pred_fallthru
        _
      %p205 = scmp.lt.s32.totalorder %s18, 2
      // Predicated region
      $region13: #{tpu_custom_call.1} parent=5 // pred_check
        %p206 = pneg %p205
      $region14: #{tpu_custom_call.1} parent=5 // pred_check_branch
        %208 = sbr.rel (%p206) target = $region16
      $region15: #{tpu_custom_call.1} parent=5 // pred_region
        // Predicated region
        $region17: #{tpu_custom_call.1} parent=15 // pred_check
          %p209 = pneg %p50
        $region18: #{tpu_custom_call.1} parent=15 // pred_check_branch
          %211 = sbr.rel (%p209) target = $region20
        $region19: #{tpu_custom_call.1} parent=15 // pred_region
          %s212 = sand.u32 %s40, 1
          %s213 = scalar_lea.sflag [#allocation3], %s212
          %s214 = sand.u32 %s40, 1
          %s215 = smul.addr %s214, 64
          %s216 = scalar_lea.vmem [#allocation2], %s215
          %s218 = ssub.s32 1024, 1024
          %219 = vsyncadd %s213, %s218
          %s220 = smul.addr %s26, 16
          %s221 = smul.addr %s220, 64
          %s222 = scalar_lea.hbm %s0, %s221
          %s223 = sshll.u32 %s216, 4
          %s224 = int_to_ptr.vmem [resolvable:$true] %s223
          %229 = dma.hbm_to_vmem [thread:$0]  %s222, 1024, %s224, %s213, 64, 64, 4
        $region20: #{tpu_custom_call.1} parent=15 // pred_fallthru
          _
        // Predicated region
        $region21: #{tpu_custom_call.1} parent=15 // pred_check
          %p230 = pneg %p76
        $region22: #{tpu_custom_call.1} parent=15 // pred_check_branch
          %232 = sbr.rel (%p230) target = $region24
        $region23: #{tpu_custom_call.1} parent=15 // pred_region
          %s233 = sand.u32 %s66, 1
          %s234 = scalar_lea.sflag [#allocation6], %s233
          %s235 = sand.u32 %s66, 1
          %s236 = smul.addr %s235, 64
          %s237 = scalar_lea.vmem [#allocation5], %s236
          %s239 = ssub.s32 1024, 1024
          %240 = vsyncadd %s234, %s239
          %s241 = smul.addr %s26, 16
          %s242 = smul.addr %s241, 64
          %s243 = scalar_lea.hbm %s1, %s242
          %s244 = sshll.u32 %s237, 4
          %s245 = int_to_ptr.vmem [resolvable:$true] %s244
          %250 = dma.hbm_to_vmem [thread:$0]  %s243, 1024, %s245, %s234, 64, 64, 4
        $region24: #{tpu_custom_call.1} parent=15 // pred_fallthru
          _
        // Predicated region
        $region25: #{tpu_custom_call.1} parent=15 // pred_check
          %p251 = pneg %p102
        $region26: #{tpu_custom_call.1} parent=15 // pred_check_branch
          %253 = sbr.rel (%p251) target = $region28
        $region27: #{tpu_custom_call.1} parent=15 // pred_region
          %p254 = scmp.lt.s32.totalorder %s26, 1
          %s255 = scalar_select %p254, %s26, 1
          %s256 = scalar_lea.vmem %s2, %s255
        $region28: #{tpu_custom_call.1} parent=15 // pred_fallthru
          _
        // Predicated region
        $region29: #{tpu_custom_call.1} parent=15 // pred_check
          %p257 = pneg %p130
        $region30: #{tpu_custom_call.1} parent=15 // pred_check_branch
          %259 = sbr.rel (%p257) target = $region32
        $region31: #{tpu_custom_call.1} parent=15 // pred_region
          %s260 = smul.u32 2, %s25
          %p261 = scmp.lt.s32.totalorder %s26, 1
          %s262 = scalar_select %p261, %s26, 1
          %p263 = scmp.lt.s32.totalorder %s260, 1
          %s264 = scalar_select %p263, %s260, 1
          %s265 = smul.addr %s262, 2
          %s266 = sadd.s32 %s264, %s265
          %s267 = smul.addr %s266, 4
          %s268 = scalar_lea.vmem %s3, %s267
          %s269 = smul.u32 2, %s25
        $region32: #{tpu_custom_call.1} parent=15 // pred_fallthru
          _
        // Predicated region
        $region33: #{tpu_custom_call.1} parent=15 // pred_check
          %p270 = pneg %p158
        $region34: #{tpu_custom_call.1} parent=15 // pred_check_branch
          %272 = sbr.rel (%p270) target = $region36
        $region35: #{tpu_custom_call.1} parent=15 // pred_region
          %s273 = smul.u32 2, %s25
          %p274 = scmp.lt.s32.totalorder %s26, 1
          %s275 = scalar_select %p274, %s26, 1
          %p276 = scmp.lt.s32.totalorder %s273, 1
          %s277 = scalar_select %p276, %s273, 1
          %s278 = smul.addr %s275, 2
          %s279 = sadd.s32 %s277, %s278
          %s280 = smul.addr %s279, 8
          %s281 = scalar_lea.vmem %s4, %s280
          %s282 = smul.u32 2, %s25
        $region36: #{tpu_custom_call.1} parent=15 // pred_fallthru
          _
      $region16: #{tpu_custom_call.1} parent=5 // pred_fallthru
        _
      %p283 = scmp.le.s32.totalorder 1, %s18
      %p284 = scmp.lt.s32.totalorder %s18, 3
      %p285 = pnand %p283, %p284
      %p286 = pneg %p285
      // Predicated region
      $region37: #{tpu_custom_call.1} parent=5 // pred_check
        _
      $region38: #{tpu_custom_call.1} parent=5 // pred_check_branch
        %288 = sbr.rel (%p285) target = $region40
      $region39: #{tpu_custom_call.1} parent=5 // pred_region
        %s289 = ssub.s32 %s18, 1
        %s290 = sand.u32 %s43, 1
        %s291 = scalar_lea.sflag [#allocation3], %s290
        %s292 = sand.u32 %s43, 1
        %s293 = smul.addr %s292, 64
        %s294 = scalar_lea.vmem [#allocation2], %s293
        // Predicated region
        $region41: #{tpu_custom_call.1} parent=39 // pred_check
          %p295 = pneg %p56
        $region42: #{tpu_custom_call.1} parent=39 // pred_check_branch
          %297 = sbr.rel (%p295) target = $region44
        $region43: #{tpu_custom_call.1} parent=39 // pred_region
          %298 = dma.done %s291, 1024
        $region44: #{tpu_custom_call.1} parent=39 // pred_fallthru
          _
        %s299 = sand.u32 %s69, 1
        %s300 = scalar_lea.sflag [#allocation6], %s299
        %s301 = sand.u32 %s69, 1
        %s302 = smul.addr %s301, 64
        %s303 = scalar_lea.vmem [#allocation5], %s302
        // Predicated region
        $region45: #{tpu_custom_call.1} parent=39 // pred_check
          %p304 = pneg %p82
        $region46: #{tpu_custom_call.1} parent=39 // pred_check_branch
          %306 = sbr.rel (%p304) target = $region48
        $region47: #{tpu_custom_call.1} parent=39 // pred_region
          %307 = dma.done %s300, 1024
        $region48: #{tpu_custom_call.1} parent=39 // pred_fallthru
          _
        %s308 = sand.u32 %s43, 1
        %s309 = scalar_lea.sflag [#allocation3], %s308
        %s310 = sand.u32 %s43, 1
        %s311 = smul.addr %s310, 64
        %s312 = scalar_lea.vmem [#allocation2], %s311
        %p313 = pneg %p56
        %p314 = pneg %p53
        %s315 = sand.u32 %s69, 1
        %s316 = scalar_lea.sflag [#allocation6], %s315
        %s317 = sand.u32 %s69, 1
        %s318 = smul.addr %s317, 64
        %s319 = scalar_lea.vmem [#allocation5], %s318
        %p320 = pneg %p82
        %p321 = pneg %p79
        %p322 = scmp.lt.s32.totalorder %s28, 1
        %s323 = scalar_select %p322, %s28, 1
        %s324 = scalar_lea.vmem %s2, %s323
        %p325 = pneg %p108
        %p326 = pneg %p105
        %s327 = smul.u32 2, %s27
        %p328 = scmp.lt.s32.totalorder %s28, 1
        %s329 = scalar_select %p328, %s28, 1
        %p330 = scmp.lt.s32.totalorder %s327, 1
        %s331 = scalar_select %p330, %s327, 1
        %s332 = smul.addr %s329, 2
        %s333 = sadd.s32 %s331, %s332
        %s334 = smul.addr %s333, 4
        %s335 = scalar_lea.vmem %s3, %s334
        %p336 = pneg %p136
        %p337 = pneg %p133
        %s338 = smul.u32 2, %s27
        %p339 = scmp.lt.s32.totalorder %s28, 1
        %s340 = scalar_select %p339, %s28, 1
        %p341 = scmp.lt.s32.totalorder %s338, 1
        %s342 = scalar_select %p341, %s338, 1
        %s343 = smul.addr %s340, 2
        %s344 = sadd.s32 %s342, %s343
        %s345 = smul.addr %s344, 8
        %s346 = scalar_lea.vmem %s4, %s345
        %p347 = pneg %p164
        %p348 = pneg %p161
        %p349 = pneg %p190
        %p350 = pneg %p187
        %p351 = scmp.lt.s32.totalorder %s28, 1
        %s352 = scalar_select %p351, %s28, 1
        %s353 = scalar_lea.vmem %s2, %s352
        %s354 = smul.u32 2, %s27
        %p355 = scmp.lt.s32.totalorder %s28, 1
        %s356 = scalar_select %p355, %s28, 1
        %p357 = scmp.lt.s32.totalorder %s354, 1
        %s358 = scalar_select %p357, %s354, 1
        %s359 = smul.addr %s356, 2
        %s360 = sadd.s32 %s358, %s359
        %s361 = smul.addr %s360, 4
        %s362 = scalar_lea.vmem %s3, %s361
        %s363 = smul.u32 2, %s27
        %s364 = smul.u32 2, %s27
        %p365 = scmp.lt.s32.totalorder %s28, 1
        %s366 = scalar_select %p365, %s28, 1
        %p367 = scmp.lt.s32.totalorder %s364, 1
        %s368 = scalar_select %p367, %s364, 1
        %s369 = smul.addr %s366, 2
        %s370 = sadd.s32 %s368, %s369
        %s371 = smul.addr %s370, 8
        %s372 = scalar_lea.vmem %s4, %s371
        %s373 = smul.u32 2, %s27
        %s374 = smul.u32 2, %s27
        %p376 = scmp.eq.s32.totalorder %s28, 0
        // Predicated region
        $region49: #{tpu_custom_call.1} parent=39 // pred_check
          %p377 = pneg %p376
        $region50: #{tpu_custom_call.1} parent=39 // pred_check_branch
          %379 = sbr.rel (%p377) target = $region52
        $region51: #{tpu_custom_call.1} parent=39 // pred_region
          %380 = vst [vmem:[#allocation7] sm:$0xff] 0.0
          %381 = vst [vmem:[#allocation7 + $0x8] sm:$0xff] 0.0
        $region52: #{tpu_custom_call.1} parent=39 // pred_fallthru
          _
        %v382 = vld [vmem:[%s294] sm:$0xf]
        %v383 = vld [vmem:[%s294 + $0x4] sm:$0xf]
        %v384 = vld [vmem:[%s294 + $0x8] sm:$0xf]
        %v385 = vld [vmem:[%s294 + $0xc] sm:$0xf]
        %v386 = vld [vmem:[%s294 + $0x10] sm:$0xf]
        %v387 = vld [vmem:[%s294 + $0x14] sm:$0xf]
        %v388 = vld [vmem:[%s294 + $0x18] sm:$0xf]
        %v389 = vld [vmem:[%s294 + $0x1c] sm:$0xf]
        %v390 = vld [vmem:[%s294 + $0x20] sm:$0xf]
        %v391 = vld [vmem:[%s294 + $0x24] sm:$0xf]
        %v392 = vld [vmem:[%s294 + $0x28] sm:$0xf]
        %v393 = vld [vmem:[%s294 + $0x2c] sm:$0xf]
        %v394 = vld [vmem:[%s294 + $0x30] sm:$0xf]
        %v395 = vld [vmem:[%s294 + $0x34] sm:$0xf]
        %v396 = vld [vmem:[%s294 + $0x38] sm:$0xf]
        %v397 = vld [vmem:[%s294 + $0x3c] sm:$0xf]
        %v398 = vld [vmem:[%s303] sm:$0xf]
        %v399 = vld [vmem:[%s303 + $0x4] sm:$0xf]
        %v400 = vld [vmem:[%s303 + $0x8] sm:$0xf]
        %v401 = vld [vmem:[%s303 + $0xc] sm:$0xf]
        %v402 = vld [vmem:[%s303 + $0x10] sm:$0xf]
        %v403 = vld [vmem:[%s303 + $0x14] sm:$0xf]
        %v404 = vld [vmem:[%s303 + $0x18] sm:$0xf]
        %v405 = vld [vmem:[%s303 + $0x1c] sm:$0xf]
        %v406 = vld [vmem:[%s303 + $0x20] sm:$0xf]
        %v407 = vld [vmem:[%s303 + $0x24] sm:$0xf]
        %v408 = vld [vmem:[%s303 + $0x28] sm:$0xf]
        %v409 = vld [vmem:[%s303 + $0x2c] sm:$0xf]
        %v410 = vld [vmem:[%s303 + $0x30] sm:$0xf]
        %v411 = vld [vmem:[%s303 + $0x34] sm:$0xf]
        %v412 = vld [vmem:[%s303 + $0x38] sm:$0xf]
        %v413 = vld [vmem:[%s303 + $0x3c] sm:$0xf]
        %v430 = vunpack.c.l.b16 %v382
        %v431 = vunpack.c.l.b16 %v383
        %v432 = vunpack.c.l.b16 %v384
        %v433 = vunpack.c.l.b16 %v385
        %v434 = vunpack.c.l.b16 %v386
        %v435 = vunpack.c.l.b16 %v387
        %v436 = vunpack.c.l.b16 %v388
        %v437 = vunpack.c.l.b16 %v389
        %v438 = vunpack.c.l.b16 %v390
        %v439 = vunpack.c.l.b16 %v391
        %v440 = vunpack.c.l.b16 %v392
        %v441 = vunpack.c.l.b16 %v393
        %v442 = vunpack.c.l.b16 %v394
        %v443 = vunpack.c.l.b16 %v395
        %v444 = vunpack.c.l.b16 %v396
        %v445 = vunpack.c.l.b16 %v397
        %v446 = vpack.c.b16 %v431, %v430
        %v447 = vpack.c.b16 %v433, %v432
        %v448 = vpack.c.b16 %v435, %v434
        %v449 = vpack.c.b16 %v437, %v436
        %v450 = vpack.c.b16 %v439, %v438
        %v451 = vpack.c.b16 %v441, %v440
        %v452 = vpack.c.b16 %v443, %v442
        %v453 = vpack.c.b16 %v445, %v444
        %v478 = vunpack.c.l.b16 %v398
        %v479 = vunpack.c.l.b16 %v399
        %v480 = vunpack.c.l.b16 %v400
        %v481 = vunpack.c.l.b16 %v401
        %v482 = vunpack.c.l.b16 %v402
        %v483 = vunpack.c.l.b16 %v403
        %v484 = vunpack.c.l.b16 %v404
        %v485 = vunpack.c.l.b16 %v405
        %v486 = vunpack.c.l.b16 %v406
        %v487 = vunpack.c.l.b16 %v407
        %v488 = vunpack.c.l.b16 %v408
        %v489 = vunpack.c.l.b16 %v409
        %v490 = vunpack.c.l.b16 %v410
        %v491 = vunpack.c.l.b16 %v411
        %v492 = vunpack.c.l.b16 %v412
        %v493 = vunpack.c.l.b16 %v413
        %v494 = vpack.c.b16 %v479, %v478
        %v495 = vpack.c.b16 %v481, %v480
        %v496 = vpack.c.b16 %v483, %v482
        %v497 = vpack.c.b16 %v485, %v484
        %v498 = vpack.c.b16 %v487, %v486
        %v499 = vpack.c.b16 %v489, %v488
        %v500 = vpack.c.b16 %v491, %v490
        %v501 = vpack.c.b16 %v493, %v492
        %510 = vmatprep.subr.bf16.mxu0 0
        %511 = vmatpush1.bf16.msra.mxu0 %v501
        %512 = vmatprep.subr.bf16.mxu0 0
        %513 = vmatpush1.bf16.msra.mxu0 %v500
        %514 = vmatprep.subr.bf16.mxu0 0
        %515 = vmatpush1.bf16.msra.mxu0 %v499
        %516 = vmatprep.subr.bf16.mxu0 0
        %517 = vmatpush1.bf16.msra.mxu0 %v498
        %518 = vmatprep.subr.bf16.mxu0 0
        %519 = vmatpush1.bf16.msra.mxu0 %v497
        %520 = vmatprep.subr.bf16.mxu0 0
        %521 = vmatpush1.bf16.msra.mxu0 %v496
        %522 = vmatprep.subr.bf16.mxu0 0
        %523 = vmatpush1.bf16.msra.mxu0 %v495
        %524 = vmatprep.subr.bf16.mxu0 0
        %525 = vmatpush1.bf16.msra.mxu0 %v494
        %526 = vmatprep.subr.bf16.mxu0 0
        %527 = vmatpush2.bf16.msra.mxu0 0
        %528 = vmatprep.subr.bf16.mxu0 0
        %529 = vmatpush2.bf16.msra.mxu0 0
        %530 = vmatprep.subr.bf16.mxu0 0
        %531 = vmatpush2.bf16.msra.mxu0 0
        %532 = vmatprep.subr.bf16.mxu0 0
        %533 = vmatpush2.bf16.msra.mxu0 0
        %534 = vmatprep.subr.bf16.mxu0 0
        %535 = vmatpush2.bf16.msra.mxu0 0
        %536 = vmatprep.subr.bf16.mxu0 0
        %537 = vmatpush2.bf16.msra.mxu0 0
        %538 = vmatprep.subr.bf16.mxu0 0
        %539 = vmatpush2.bf16.msra.mxu0 0
        %540 = vmatprep.subr.bf16.mxu0 0
        %541 = vmatpush2.bf16.msra.mxu0 0
        %542 = vmatprep.mubr.bf16.mxu0 0
        %543 = vmatmul.mubr.bf16.gmra.mxu0 %v446
        %v544 = vpop.f32.mrf.mxu0
        %v545 = vadd.f32 0.0, %v544
        %v546 = vpop.f32.mrf.mxu0
        %v547 = vpop.f32.mrf.mxu0
        %v548 = vadd.f32 0.0, %v547
        %v549 = vpop.f32.mrf.mxu0
        %550 = vmatprep.mubr.bf16.mxu0 0
        %551 = vmatmul.mubr.bf16.gmra.mxu0 %v447
        %v552 = vpop.f32.mrf.mxu0
        %v553 = vadd.f32 0.0, %v552
        %v554 = vpop.f32.mrf.mxu0
        %v555 = vpop.f32.mrf.mxu0
        %v556 = vadd.f32 0.0, %v555
        %v557 = vpop.f32.mrf.mxu0
        %558 = vmatprep.mubr.bf16.mxu0 0
        %559 = vmatmul.mubr.bf16.gmra.mxu0 %v448
        %v560 = vpop.f32.mrf.mxu0
        %v561 = vadd.f32 0.0, %v560
        %v562 = vpop.f32.mrf.mxu0
        %v563 = vpop.f32.mrf.mxu0
        %v564 = vadd.f32 0.0, %v563
        %v565 = vpop.f32.mrf.mxu0
        %566 = vmatprep.mubr.bf16.mxu0 0
        %567 = vmatmul.mubr.bf16.gmra.mxu0 %v449
        %v568 = vpop.f32.mrf.mxu0
        %v569 = vadd.f32 0.0, %v568
        %v570 = vpop.f32.mrf.mxu0
        %v571 = vpop.f32.mrf.mxu0
        %v572 = vadd.f32 0.0, %v571
        %v573 = vpop.f32.mrf.mxu0
        %574 = vmatprep.mubr.bf16.mxu0 0
        %575 = vmatmul.mubr.bf16.gmra.mxu0 %v450
        %v576 = vpop.f32.mrf.mxu0
        %v577 = vadd.f32 0.0, %v576
        %v578 = vpop.f32.mrf.mxu0
        %v579 = vpop.f32.mrf.mxu0
        %v580 = vadd.f32 0.0, %v579
        %v581 = vpop.f32.mrf.mxu0
        %582 = vmatprep.mubr.bf16.mxu0 0
        %583 = vmatmul.mubr.bf16.gmra.mxu0 %v451
        %v584 = vpop.f32.mrf.mxu0
        %v585 = vadd.f32 0.0, %v584
        %v586 = vpop.f32.mrf.mxu0
        %v587 = vpop.f32.mrf.mxu0
        %v588 = vadd.f32 0.0, %v587
        %v589 = vpop.f32.mrf.mxu0
        %590 = vmatprep.mubr.bf16.mxu0 0
        %591 = vmatmul.mubr.bf16.gmra.mxu0 %v452
        %v592 = vpop.f32.mrf.mxu0
        %v593 = vadd.f32 0.0, %v592
        %v594 = vpop.f32.mrf.mxu0
        %v595 = vpop.f32.mrf.mxu0
        %v596 = vadd.f32 0.0, %v595
        %v597 = vpop.f32.mrf.mxu0
        %598 = vmatprep.mubr.bf16.mxu0 0
        %599 = vmatmul.mubr.bf16.gmra.mxu0 %v453
        %v600 = vpop.f32.mrf.mxu0
        %v601 = vadd.f32 0.0, %v600
        %v602 = vpop.f32.mrf.mxu0
        %v603 = vpop.f32.mrf.mxu0
        %v604 = vadd.f32 0.0, %v603
        %v605 = vpop.f32.mrf.mxu0
        %606 = vdwg.mxu0
        %v607 = vld [vmem:[%s362] sm:$0xf]
        %v608 = vld [vmem:[%s362 + $0x4] sm:$0xf]
        %v609 = vpack.c.bf16 %v548, %v545
        %v610 = vpack.c.bf16 %v556, %v553
        %v611 = vpack.c.bf16 %v564, %v561
        %v612 = vpack.c.bf16 %v572, %v569
        %v613 = vpack.c.bf16 %v580, %v577
        %v614 = vpack.c.bf16 %v588, %v585
        %v615 = vpack.c.bf16 %v596, %v593
        %v616 = vpack.c.bf16 %v604, %v601
        %v617 = vld [vmem:[#allocation7] sm:$0xff]
        %v618 = vld [vmem:[#allocation7 + $0x8] sm:$0xff]
        %v619 = vld [vmem:[%s372] sm:$0xff]
        %v620 = vld [vmem:[%s372 + $0x8] sm:$0xff]
        %v621 = vld [vmem:[%s353] sm:$0x1]
        %623 = vset.pattern.permute.xlu0 0
        %624 = vperm.xlu0 %623, %v619
        %v625 = vpop.permute.xlu0 %624
        %628 = vset.pattern.permute.xlu0 0
        %629 = vperm.xlu0 %628, %v620
        %v630 = vpop.permute.xlu0 %629
        %v633 = vlaneseq
        %v634 = vshrl.u32 %v633, 7
        %v635 = vsub.s32 0, %v634
        %v636 = vrot.slane %v621, %v635
        %v638 = vmul.f32 %v625, %v636
        %v639 = vmul.f32 %v630, %v636
        %v642 = vunpack.c.l.b16 %v607
        %v643 = vunpack.c.l.b16 %v608
        %v644 = vpack.c.b16 %v643, %v642
        %646 = vmatprep.subr.bf16.mxu0 0
        %647 = vmatpush1.bf16.msra.mxu0 %v616
        %648 = vmatprep.subr.bf16.mxu0 0
        %649 = vmatpush1.bf16.msra.mxu0 %v615
        %650 = vmatprep.subr.bf16.mxu0 0
        %651 = vmatpush1.bf16.msra.mxu0 %v614
        %652 = vmatprep.subr.bf16.mxu0 0
        %653 = vmatpush1.bf16.msra.mxu0 %v613
        %654 = vmatprep.subr.bf16.mxu0 0
        %655 = vmatpush1.bf16.msra.mxu0 %v612
        %656 = vmatprep.subr.bf16.mxu0 0
        %657 = vmatpush1.bf16.msra.mxu0 %v611
        %658 = vmatprep.subr.bf16.mxu0 0
        %659 = vmatpush1.bf16.msra.mxu0 %v610
        %660 = vmatprep.subr.bf16.mxu0 0
        %661 = vmatpush1.bf16.msra.mxu0 %v609
        %662 = vmatprep.subr.bf16.mxu0 0
        %663 = vmatpush2.bf16.msra.mxu0 0
        %664 = vmatprep.subr.bf16.mxu0 0
        %665 = vmatpush2.bf16.msra.mxu0 0
        %666 = vmatprep.subr.bf16.mxu0 0
        %667 = vmatpush2.bf16.msra.mxu0 0
        %668 = vmatprep.subr.bf16.mxu0 0
        %669 = vmatpush2.bf16.msra.mxu0 0
        %670 = vmatprep.subr.bf16.mxu0 0
        %671 = vmatpush2.bf16.msra.mxu0 0
        %672 = vmatprep.subr.bf16.mxu0 0
        %673 = vmatpush2.bf16.msra.mxu0 0
        %674 = vmatprep.subr.bf16.mxu0 0
        %675 = vmatpush2.bf16.msra.mxu0 0
        %676 = vmatprep.subr.bf16.mxu0 0
        %677 = vmatpush2.bf16.msra.mxu0 0
        %678 = vmatprep.mubr.bf16.mxu0 0
        %679 = vmatmul.mubr.bf16.gmra.mxu0 %v644
        %v680 = vpop.f32.mrf.mxu0
        %v681 = vadd.f32 %v638, %v680
        %v682 = vpop.f32.mrf.mxu0
        %v683 = vpop.f32.mrf.mxu0
        %v684 = vadd.f32 %v639, %v683
        %v685 = vpop.f32.mrf.mxu0
        %686 = vdwg.mxu0
        %v687 = vadd.f32 %v617, %v681
        %v688 = vadd.f32 %v618, %v684
        %689 = vst [vmem:[#allocation7] sm:$0xff] %v687
        %690 = vst [vmem:[#allocation7 + $0x8] sm:$0xff] %v688
        %p691 = scmp.eq.s32.totalorder %s28, 1
        // Predicated region
        $region53: #{tpu_custom_call.1} parent=39 // pred_check
          %p692 = pneg %p691
        $region54: #{tpu_custom_call.1} parent=39 // pred_check_branch
          %694 = sbr.rel (%p692) target = $region56
        $region55: #{tpu_custom_call.1} parent=39 // pred_region
          %v695 = vld [vmem:[#allocation7] sm:$0xff]
          %v696 = vld [vmem:[#allocation7 + $0x8] sm:$0xff]
          %vm697 = vcmp.ge.f32.partialorder %v695, 0.0
          %vm698 = vcmp.ge.f32.partialorder %v696, 0.0
          %v699 = vmul.f32 %v695, 0.01
          %v700 = vmul.f32 %v696, 0.01
          %v701 = vsel %vm697, %v695, %v699
          %v702 = vsel %vm698, %v696, %v700
          %703 = vst [vmem:[#allocation7] sm:$0xff] %v701
          %704 = vst [vmem:[#allocation7 + $0x8] sm:$0xff] %v702
        $region56: #{tpu_custom_call.1} parent=39 // pred_fallthru
          _
        // Predicated region
        $region57: #{tpu_custom_call.1} parent=39 // pred_check
          %p705 = pneg %p187
        $region58: #{tpu_custom_call.1} parent=39 // pred_check_branch
          %707 = sbr.rel (%p705) target = $region60
        $region59: #{tpu_custom_call.1} parent=39 // pred_region
          %s708 = smul.u32 2, %s27
          %s710 = ssub.s32 256, 256
          %711 = vsyncadd [#allocation4], %s710
          %s712 = smul.addr %s708, 128
          %s713 = scalar_lea.hbm %s5, %s712
          %s714 = sshll.u32 [#allocation7], 4
          %s715 = int_to_ptr.vmem [resolvable:$true] %s714
          %720 = dma.vmem_to_hbm [thread:$0]  %s715, 256, %s713, [#allocation4], 128, 128, 8
        $region60: #{tpu_custom_call.1} parent=39 // pred_fallthru
          _
        // Predicated region
        $region61: #{tpu_custom_call.1} parent=39 // pred_check
          %p721 = pneg %p187
        $region62: #{tpu_custom_call.1} parent=39 // pred_check_branch
          %723 = sbr.rel (%p721) target = $region64
        $region63: #{tpu_custom_call.1} parent=39 // pred_region
          %724 = dma.done [#allocation4], 256
        $region64: #{tpu_custom_call.1} parent=39 // pred_fallthru
          _
      $region40: #{tpu_custom_call.1} parent=5 // pred_fallthru
        _
      %p725 = scmp.le.s32.totalorder 2, %s18
      // Predicated region
      $region65: #{tpu_custom_call.1} parent=5 // pred_check
        %p726 = pneg %p725
      $region66: #{tpu_custom_call.1} parent=5 // pred_check_branch
        %728 = sbr.rel (%p726) target = $region68
      $region67: #{tpu_custom_call.1} parent=5 // pred_region
        %s729 = ssub.s32 %s18, 2
      $region68: #{tpu_custom_call.1} parent=5 // pred_fallthru
        _
    $region6: #{tpu_custom_call.1} parent=1 // loop_footer
      %s22 = sadd.s32 1, %s18
    $region7: #{tpu_custom_call.1} parent=1 // loop_footer_branch
      %17 = sbr.rel target = $region3
    $region8: #{tpu_custom_call.1} parent=1 // loop_exit
      _
    %730 = vsyncpa [#allocation3], 1
    %s731 = scalar_lea.sflag [#allocation3], 1
    %732 = vsyncpa %s731, 1
    %733 = vsyncpa [#allocation6], 1
    %s734 = scalar_lea.sflag [#allocation6], 1
    %735 = vsyncpa %s734, 1
    %736 = vsyncpa [#allocation4], 1
    %s737 = scalar_lea.sflag [#allocation4], 1
    %738 = vsyncpa %s737, 1

</llo_original>
